<compile_context>
chip_gen: v7x
topology: tpu7x:2x2x1
jax: 0.10.0
libtpu: 0.0.40
codegen_flags: <defaults>
</compile_context>

<pallas_src>
import jax
import jax.numpy as jnp
from jax.experimental import pallas as pl
from jax.experimental.pallas import tpu as pltpu


def _round_up(x, m):
    return (x + m - 1) // m * m


# ----------------------------------------------------------------------------
# Pallas kernel: fused (Linear+BN folded) -> ReLU -> (Linear+BN folded) ->
#                ReLU -> Linear -> sigmoid -> joint-limit rescale
# ----------------------------------------------------------------------------
def ik_kernel(
    x_ref,
    w1_ref, c1_ref,
    w2_ref, c2_ref,
    w3_ref, b3_ref,
    qmin_ref, qrange_ref,
    out_ref,
):
    # Layer 1: Linear (BN folded) + ReLU.  bf16 operands, f32 accumulation.
    xb = x_ref[...].astype(jnp.bfloat16)
    h = jnp.dot(xb, w1_ref[...], preferred_element_type=jnp.float32) + c1_ref[...]
    h = jnp.maximum(h, 0.0)

    # Layer 2: Linear (BN folded) + ReLU.
    h = jnp.dot(h.astype(jnp.bfloat16), w2_ref[...],
                preferred_element_type=jnp.float32) + c2_ref[...]
    h = jnp.maximum(h, 0.0)

    # Output layer: Linear -> sigmoid -> joint-limit rescale (all f32).
    y = jnp.dot(h.astype(jnp.bfloat16), w3_ref[...],
                preferred_element_type=jnp.float32) + b3_ref[...]
    # TODO(synk): if xprof shows EUP (sigmoid) saturating on v6e/v7x once the
    # output DMA is slimmed, switch the sigmoid to bf16 or a transposed
    # (out_dim, tb) tail so the batch sits on lanes; keep f32 on v5e.
    out_ref[...] = jax.nn.sigmoid(y) * qrange_ref[...] + qmin_ref[...]


def inverse_kinematics_forward(x, params, tile_b=8192,
                               vmem_limit_bytes=48 * 1024 * 1024):
    """Fused InverseKinematicsNN forward pass via Pallas.

    x: (B, input_dim) float32 (bf16 also accepted)
    params: dict from init_params (BN folded, bf16 weights, unpadded output)
    returns: (B, output_dim) float32
    """
    B, in_dim = x.shape
    out_dim = params["out_dim"]
    h1 = params["w1"].shape[1]
    h2 = params["w2"].shape[1]

    # Batch tile: multiple of 8 sublanes, capped at tile_b.  Ragged last block
    # (B % tb != 0) is masked by Pallas -- no host-side pad or slice.
    tb = min(tile_b, _round_up(B, 8))
    grid = (pl.cdiv(B, tb),)

    args = (
        x,
        params["w1"], params["c1"],
        params["w2"], params["c2"],
        params["w3"], params["b3"],
        params["qmin"], params["qrange"],
    )

    # x / out are batch-tiled; every weight/bias/limit vector is a full-array
    # block whose block index never changes, so it stays resident in VMEM
    # across the whole grid.
    in_specs = [pl.BlockSpec((tb, in_dim), lambda i: (i, 0))]
    in_specs += [pl.BlockSpec(a.shape, lambda i: (0, 0)) for a in args[1:]]
    out_spec = pl.BlockSpec((tb, out_dim), lambda i: (i, 0))

    weight_bytes = sum(a.size * a.dtype.itemsize for a in args[1:])
    cost = pl.CostEstimate(
        flops=2 * B * (in_dim * h1 + h1 * h2 + h2 * out_dim),
        transcendentals=B * out_dim,
        bytes_accessed=x.size * x.dtype.itemsize
        + B * out_dim * 4
        + weight_bytes,
    )

    return pl.pallas_call(
        ik_kernel,
        out_shape=jax.ShapeDtypeStruct((B, out_dim), jnp.float32),
        grid=grid,
        in_specs=in_specs,
        out_specs=out_spec,
        compiler_params=pltpu.CompilerParams(
            # Batch axis is embarrassingly parallel -> lets v7x shard it
            # across both TensorCores (verify the split in xprof; switch to
            # CORE_PARALLEL / core_map only if one TC sits idle).
            dimension_semantics=("parallel",),
            # Explicit cap: large enough for tb=8192 double-buffering, small
            # enough to stay inside v7x's 64 MiB physical VMEM.
            vmem_limit_bytes=vmem_limit_bytes,
        ),
        cost_estimate=cost,
    )(*args)


# ----------------------------------------------------------------------------
# Deterministic parameter initialization (synthetic; no checkpoint load).
# Eval-mode BatchNorm is folded into the preceding Linear here.
# ----------------------------------------------------------------------------
def init_params(key, input_dim, hidden_units, output_dim, eps=1e-5):
    keys = jax.random.split(key, 8)

    def linear(k, fan_in, fan_out):
        bound = 1.0 / jnp.sqrt(fan_in)
        kw, kb = jax.random.split(k)
        w = jax.random.uniform(kw, (fan_in, fan_out), jnp.float32, -bound, bound)
        b = jax.random.uniform(kb, (1, fan_out), jnp.float32, -bound, bound)
        return w, b

    h1, h2 = hidden_units
    w1, b1 = linear(keys[0], input_dim, h1)
    w2, b2 = linear(keys[1], h1, h2)
    w3, b3 = linear(keys[2], h2, output_dim)

    # BatchNorm1d (eval mode) as per-feature scale/shift (perturbed from the
    # default torch init so the BN path is actually exercised).
    def bn_affine(k, n):
        kg, kb2, km, kv = jax.random.split(k, 4)
        gamma = 1.0 + 0.1 * jax.random.normal(kg, (1, n), jnp.float32)
        beta = 0.1 * jax.random.normal(kb2, (1, n), jnp.float32)
        mean = 0.1 * jax.random.normal(km, (1, n), jnp.float32)
        var = 1.0 + 0.1 * jax.random.uniform(kv, (1, n), jnp.float32)
        scale = gamma / jnp.sqrt(var + eps)
        shift = beta - mean * scale
        return scale, shift

    s1, t1 = bn_affine(keys[3], h1)
    s2, t2 = bn_affine(keys[4], h2)

    # Fold BN into the Linear layers:  relu((x @ w + b) * s + t)
    #                                = relu(x @ (w * s) + (b * s + t))
    w1f = w1 * s1
    c1 = b1 * s1 + t1
    w2f = w2 * s2
    c2 = b2 * s2 + t2

    # Synthetic NAO joint limits: q_min / q_max per output joint; precompute
    # qrange = qmax - qmin once.
    idx = jnp.arange(output_dim, dtype=jnp.float32)
    qmin = (-1.5 + 0.05 * idx).reshape(1, output_dim)
    qmax = (1.5 - 0.03 * idx).reshape(1, output_dim)
    qrange = qmax - qmin

    return dict(
        # bf16 weights (MXU-native operands); f32 accumulation in-kernel.
        w1=w1f.astype(jnp.bfloat16),
        w2=w2f.astype(jnp.bfloat16),
        w3=w3.astype(jnp.bfloat16),
        # f32 elementwise operands (all unpadded: shape (1, feature_dim)).
        c1=c1, c2=c2, b3=b3,
        qmin=qmin, qrange=qrange,
        out_dim=output_dim,
        # Kept for the pure-f32 reference check only.
        _ref=dict(w1=w1f, c1=c1, w2=w2f, c2=c2, w3=w3, b3=b3,
                  qmin=qmin, qrange=qrange),
    )


def reference_forward_bf16(x, p):
    """Pure-JAX reference using the same bf16-operand / f32-accumulate dots."""
    xb = x.astype(jnp.bfloat16)
    h = jnp.maximum(
        jnp.dot(xb, p["w1"], preferred_element_type=jnp.float32) + p["c1"], 0.0)
    h = jnp.maximum(
        jnp.dot(h.astype(jnp.bfloat16), p["w2"],
                preferred_element_type=jnp.float32) + p["c2"], 0.0)
    y = jnp.dot(h.astype(jnp.bfloat16), p["w3"],
                preferred_element_type=jnp.float32) + p["b3"]
    return jax.nn.sigmoid(y) * p["qrange"] + p["qmin"]


def reference_forward_f32(x, p):
    """Full-f32 reference of the original module semantics (BN already folded)."""
    r = p["_ref"]
    h = jnp.maximum(x @ r["w1"] + r["c1"], 0.0)
    h = jnp.maximum(h @ r["w2"] + r["c2"], 0.0)
    y = h @ r["w3"] + r["b3"]
    return jax.nn.sigmoid(y) * r["qrange"] + r["qmin"]


if __name__ == "__main__":
    B = 8
    input_dim = 32
    hidden_units = [128, 128]
    output_dim = 8

    key = jax.random.PRNGKey(0)
    kx, kp = jax.random.split(key)
    x = jax.random.normal(kx, (B, input_dim), dtype=jnp.float32)
    params = init_params(kp, input_dim, hidden_units, output_dim)

    out = inverse_kinematics_forward(x, params)
    out = jax.block_until_ready(out)
    assert out.shape == (B, output_dim)

    # Tight check vs. a pure-JAX reference using the same bf16-MXU recipe.
    ref_bf16 = reference_forward_bf16(x, params)
    assert jnp.allclose(out, ref_bf16, atol=2e-3, rtol=2e-3), "bf16 ref mismatch"

    # Loose check vs. the original full-f32 module semantics (bf16 rounding
    # of the MXU operands is the only difference).
    ref_f32 = reference_forward_f32(x, params)
    assert jnp.allclose(out, ref_f32, atol=5e-2, rtol=5e-2), "f32 ref mismatch"

    print("KERNEL_OK")
</pallas_src>

<mosaic_0001>
module attributes {stable_mosaic.version = 11 : i64} {
  func.func @ik_kernel(%arg0: i32, %arg1: memref<8x32xf32, #tpu.memory_space<vmem>>, %arg2: memref<32x128xbf16, #tpu.memory_space<vmem>>, %arg3: memref<1x128xf32, #tpu.memory_space<vmem>>, %arg4: memref<128x128xbf16, #tpu.memory_space<vmem>>, %arg5: memref<1x128xf32, #tpu.memory_space<vmem>>, %arg6: memref<128x8xbf16, #tpu.memory_space<vmem>>, %arg7: memref<1x8xf32, #tpu.memory_space<vmem>>, %arg8: memref<1x8xf32, #tpu.memory_space<vmem>>, %arg9: memref<1x8xf32, #tpu.memory_space<vmem>>, %arg10: memref<8x8xf32, #tpu.memory_space<vmem>>) attributes {dimension_semantics = [#tpu.dimension_semantics<parallel>], iteration_bounds = array<i64: 1>, scalar_prefetch = 0 : i64, scratch_operands = 0 : i64, tpu.core_type = #tpu.core_type<tc>, window_params = [{transform_indices = @transform_0, window_bounds = array<i64: 8, 32>}, {pipeline_mode = #tpu.pipeline_mode<synchronous>, transform_indices = @transform_1, window_bounds = array<i64: 32, 128>}, {pipeline_mode = #tpu.pipeline_mode<synchronous>, transform_indices = @transform_2, window_bounds = array<i64: 1, 128>}, {pipeline_mode = #tpu.pipeline_mode<synchronous>, transform_indices = @transform_3, window_bounds = array<i64: 128, 128>}, {pipeline_mode = #tpu.pipeline_mode<synchronous>, transform_indices = @transform_4, window_bounds = array<i64: 1, 128>}, {pipeline_mode = #tpu.pipeline_mode<synchronous>, transform_indices = @transform_5, window_bounds = array<i64: 128, 8>}, {pipeline_mode = #tpu.pipeline_mode<synchronous>, transform_indices = @transform_6, window_bounds = array<i64: 1, 8>}, {pipeline_mode = #tpu.pipeline_mode<synchronous>, transform_indices = @transform_7, window_bounds = array<i64: 1, 8>}, {pipeline_mode = #tpu.pipeline_mode<synchronous>, transform_indices = @transform_8, window_bounds = array<i64: 1, 8>}, {transform_indices = @transform_9, window_bounds = array<i64: 8, 8>}]} {
    %c0 = arith.constant 0 : index
    %c0_0 = arith.constant 0 : index
    %0 = vector.load %arg1[%c0, %c0_0] : memref<8x32xf32, #tpu.memory_space<vmem>>, vector<8x32xf32>
    %1 = arith.truncf %0 : vector<8x32xf32> to vector<8x32xbf16>
    %c0_1 = arith.constant 0 : index
    %c0_2 = arith.constant 0 : index
    %2 = vector.load %arg2[%c0_1, %c0_2] : memref<32x128xbf16, #tpu.memory_space<vmem>>, vector<32x128xbf16>
    %cst = arith.constant dense<0.000000e+00> : vector<8x128xf32>
    %3 = tpu.matmul %1, %2, %cst {dimension_numbers = #tpu.dot_dimension_numbers<[1], [0], [0], [1], [0, 0, 1, 1], [], []>} : vector<8x32xbf16>, vector<32x128xbf16>, vector<8x128xf32> -> vector<8x128xf32>
    %c0_3 = arith.constant 0 : index
    %c0_4 = arith.constant 0 : index
    %4 = vector.load %arg3[%c0_3, %c0_4] : memref<1x128xf32, #tpu.memory_space<vmem>>, vector<1x128xf32>
    %5 = vector.broadcast %4 : vector<1x128xf32> to vector<8x128xf32>
    %6 = arith.addf %3, %5 : vector<8x128xf32>
    %cst_5 = arith.constant 0.000000e+00 : f32
    %7 = vector.broadcast %cst_5 : f32 to vector<8x128xf32>
    %8 = arith.maximumf %6, %7 : vector<8x128xf32>
    %9 = arith.truncf %8 : vector<8x128xf32> to vector<8x128xbf16>
    %c0_6 = arith.constant 0 : index
    %c0_7 = arith.constant 0 : index
    %10 = vector.load %arg4[%c0_6, %c0_7] : memref<128x128xbf16, #tpu.memory_space<vmem>>, vector<128x128xbf16>
    %cst_8 = arith.constant dense<0.000000e+00> : vector<8x128xf32>
    %11 = tpu.matmul %9, %10, %cst_8 {dimension_numbers = #tpu.dot_dimension_numbers<[1], [0], [0], [1], [0, 0, 1, 1], [], []>} : vector<8x128xbf16>, vector<128x128xbf16>, vector<8x128xf32> -> vector<8x128xf32>
    %c0_9 = arith.constant 0 : index
    %c0_10 = arith.constant 0 : index
    %12 = vector.load %arg5[%c0_9, %c0_10] : memref<1x128xf32, #tpu.memory_space<vmem>>, vector<1x128xf32>
    %13 = vector.broadcast %12 : vector<1x128xf32> to vector<8x128xf32>
    %14 = arith.addf %11, %13 : vector<8x128xf32>
    %cst_11 = arith.constant 0.000000e+00 : f32
    %15 = vector.broadcast %cst_11 : f32 to vector<8x128xf32>
    %16 = arith.maximumf %14, %15 : vector<8x128xf32>
    %17 = arith.truncf %16 : vector<8x128xf32> to vector<8x128xbf16>
    %c0_12 = arith.constant 0 : index
    %c0_13 = arith.constant 0 : index
    %18 = vector.load %arg6[%c0_12, %c0_13] : memref<128x8xbf16, #tpu.memory_space<vmem>>, vector<128x8xbf16>
    %cst_14 = arith.constant dense<0.000000e+00> : vector<8x8xf32>
    %19 = tpu.matmul %17, %18, %cst_14 {dimension_numbers = #tpu.dot_dimension_numbers<[1], [0], [0], [1], [0, 0, 1, 1], [], []>} : vector<8x128xbf16>, vector<128x8xbf16>, vector<8x8xf32> -> vector<8x8xf32>
    %c0_15 = arith.constant 0 : index
    %c0_16 = arith.constant 0 : index
    %20 = vector.load %arg7[%c0_15, %c0_16] : memref<1x8xf32, #tpu.memory_space<vmem>>, vector<1x8xf32>
    %21 = vector.broadcast %20 : vector<1x8xf32> to vector<8x8xf32>
    %22 = arith.addf %19, %21 : vector<8x8xf32>
    %23 = arith.negf %22 : vector<8x8xf32>
    %24 = math.exp %23 : vector<8x8xf32>
    %cst_17 = arith.constant 1.000000e+00 : f32
    %25 = vector.broadcast %cst_17 : f32 to vector<8x8xf32>
    %26 = arith.addf %25, %24 : vector<8x8xf32>
    %27 = arith.divf %25, %26 : vector<8x8xf32>
    %c0_18 = arith.constant 0 : index
    %c0_19 = arith.constant 0 : index
    %28 = vector.load %arg9[%c0_18, %c0_19] : memref<1x8xf32, #tpu.memory_space<vmem>>, vector<1x8xf32>
    %29 = vector.broadcast %28 : vector<1x8xf32> to vector<8x8xf32>
    %30 = arith.mulf %27, %29 : vector<8x8xf32>
    %c0_20 = arith.constant 0 : index
    %c0_21 = arith.constant 0 : index
    %31 = vector.load %arg8[%c0_20, %c0_21] : memref<1x8xf32, #tpu.memory_space<vmem>>, vector<1x8xf32>
    %32 = vector.broadcast %31 : vector<1x8xf32> to vector<8x8xf32>
    %33 = arith.addf %30, %32 : vector<8x8xf32>
    %c0_22 = arith.constant 0 : index
    %c0_23 = arith.constant 0 : index
    %34 = vector.load %arg10[%c0_22, %c0_23] : memref<8x8xf32, #tpu.memory_space<vmem>>, vector<8x8xf32>
    tpu.vector_store %arg10[%c0_22, %c0_23], %33 {strides = array<i32>} : memref<8x8xf32, #tpu.memory_space<vmem>>, vector<8x8xf32>,
    return
  }
  func.func @transform_0(%arg0: i32) -> (i32, i32) {
    %c0_i32 = arith.constant 0 : i32
    %c0_i32_0 = arith.constant 0 : i32
    return %arg0, %c0_i32 : i32, i32
  }
  func.func @transform_1(%arg0: i32) -> (i32, i32) {
    %c0_i32 = arith.constant 0 : i32
    %c0_i32_0 = arith.constant 0 : i32
    %c0_i32_1 = arith.constant 0 : i32
    return %c0_i32, %c0_i32_0 : i32, i32
  }
  func.func @transform_2(%arg0: i32) -> (i32, i32) {
    %c0_i32 = arith.constant 0 : i32
    %c0_i32_0 = arith.constant 0 : i32
    %c0_i32_1 = arith.constant 0 : i32
    return %c0_i32, %c0_i32_0 : i32, i32
  }
  func.func @transform_3(%arg0: i32) -> (i32, i32) {
    %c0_i32 = arith.constant 0 : i32
    %c0_i32_0 = arith.constant 0 : i32
    %c0_i32_1 = arith.constant 0 : i32
    return %c0_i32, %c0_i32_0 : i32, i32
  }
  func.func @transform_4(%arg0: i32) -> (i32, i32) {
    %c0_i32 = arith.constant 0 : i32
    %c0_i32_0 = arith.constant 0 : i32
    %c0_i32_1 = arith.constant 0 : i32
    return %c0_i32, %c0_i32_0 : i32, i32
  }
  func.func @transform_5(%arg0: i32) -> (i32, i32) {
    %c0_i32 = arith.constant 0 : i32
    %c0_i32_0 = arith.constant 0 : i32
    %c0_i32_1 = arith.constant 0 : i32
    return %c0_i32, %c0_i32_0 : i32, i32
  }
  func.func @transform_6(%arg0: i32) -> (i32, i32) {
    %c0_i32 = arith.constant 0 : i32
    %c0_i32_0 = arith.constant 0 : i32
    %c0_i32_1 = arith.constant 0 : i32
    return %c0_i32, %c0_i32_0 : i32, i32
  }
  func.func @transform_7(%arg0: i32) -> (i32, i32) {
    %c0_i32 = arith.constant 0 : i32
    %c0_i32_0 = arith.constant 0 : i32
    %c0_i32_1 = arith.constant 0 : i32
    return %c0_i32, %c0_i32_0 : i32, i32
  }
  func.func @transform_8(%arg0: i32) -> (i32, i32) {
    %c0_i32 = arith.constant 0 : i32
    %c0_i32_0 = arith.constant 0 : i32
    %c0_i32_1 = arith.constant 0 : i32
    return %c0_i32, %c0_i32_0 : i32, i32
  }
  func.func @transform_9(%arg0: i32) -> (i32, i32) {
    %c0_i32 = arith.constant 0 : i32
    %c0_i32_0 = arith.constant 0 : i32
    return %arg0, %c0_i32 : i32, i32
  }
}

</mosaic_0001>

<llo_original>
// kernel: tpu_custom_call.1
$region0: #{tpu_custom_call.1}
  #allocation0 [shape = 'u32[]', space=smem, size = 0x4, offset = 0x4, fixed_abs, tag = 'smem constant byte address 0x4 - core index']
  #allocation1 [shape = 'u32[144,128]{1,0:T(1,128)}', space=vmem, size = 0x12000, scoped, tag = 'internal scratch']
  %s0 = inlined_call_operand.vmem [shape: f32[8,32], index: 0, kind: input, shape index: {}]
  %s1 = inlined_call_operand.hbm [shape: bf16[32,128], index: 1, kind: input, shape index: {}]
  %s2 = inlined_call_operand.vmem [shape: f32[1,128], index: 2, kind: input, shape index: {}]
  %s3 = inlined_call_operand.vmem [shape: bf16[128,128], index: 3, kind: input, shape index: {}]
  %s4 = inlined_call_operand.vmem [shape: f32[1,128], index: 4, kind: input, shape index: {}]
  %s5 = inlined_call_operand.vmem [shape: bf16[128,8], index: 5, kind: input, shape index: {}]
  %s6 = inlined_call_operand.vmem [shape: f32[1,8], index: 6, kind: input, shape index: {}]
  %s7 = inlined_call_operand.vmem [shape: f32[1,8], index: 7, kind: input, shape index: {}]
  %s8 = inlined_call_operand.vmem [shape: f32[1,8], index: 8, kind: input, shape index: {}]
  %s9 = inlined_call_operand.hbm [shape: f32[8,8], index: 9, kind: output, shape index: {}]
  %s10 = sld [smem:[#allocation0]]
  $region50: #{tpu_custom_call.1} parent=0
    _
  %s12 = ssub.s32 1, %s10
  %s13 = scalar_select 0, %s12, %s10
  $region1: #{tpu_custom_call.1} parent=0
    #allocation2 [shape = 'u8[8192]{0}', space=vmem, size = 0x2000, scoped, tag = 'input window, operand 1, single buffered']
    #allocation3 [shape = 's32[1]{0}', space=sflag, size = 0x4, scoped, tag = 'scoped memory for tpu_custom_call.1']
    #allocation4 [shape = 's32[1]{0}', space=sflag, size = 0x4, scoped, tag = 'scoped memory for tpu_custom_call.1']
    #allocation5 [shape = 'u8[4096]{0}', space=vmem, size = 0x1000, scoped, tag = 'output window, operand 0, single buffered']
    %14 = vsyncpa [#allocation3], 0
    %15 = vsyncpa [#allocation4], 0
    // Predicated region
    $region2: #{tpu_custom_call.1} parent=1 // pred_check
      _
    $region3: #{tpu_custom_call.1} parent=1 // pred_check_branch
      %17 = sbr.rel (0) target = $region5
    $region4: #{tpu_custom_call.1} parent=1 // pred_region
      _
    $region5: #{tpu_custom_call.1} parent=1 // pred_fallthru
      _
    // Predicated region
    $region6: #{tpu_custom_call.1} parent=1 // pred_check
      _
    $region7: #{tpu_custom_call.1} parent=1 // pred_check_branch
      %19 = sbr.rel (0) target = $region9
    $region8: #{tpu_custom_call.1} parent=1 // pred_region
      %s21 = ssub.s32 256, 256
      %22 = vsyncadd [#allocation3], %s21
      %s23 = sshll.u32 [#allocation2], 4
      %s24 = int_to_ptr.vmem [resolvable:$true] %s23
      %29 = dma.hbm_to_vmem [thread:$0]  %s1, 256, %s24, [#allocation3], 64, 64, 4
    $region9: #{tpu_custom_call.1} parent=1 // pred_fallthru
      _
    // Predicated region
    $region10: #{tpu_custom_call.1} parent=1 // pred_check
      _
    $region11: #{tpu_custom_call.1} parent=1 // pred_check_branch
      %31 = sbr.rel (0) target = $region13
    $region12: #{tpu_custom_call.1} parent=1 // pred_region
      _
    $region13: #{tpu_custom_call.1} parent=1 // pred_fallthru
      _
    // Predicated region
    $region14: #{tpu_custom_call.1} parent=1 // pred_check
      _
    $region15: #{tpu_custom_call.1} parent=1 // pred_check_branch
      %33 = sbr.rel (0) target = $region17
    $region16: #{tpu_custom_call.1} parent=1 // pred_region
      _
    $region17: #{tpu_custom_call.1} parent=1 // pred_fallthru
      _
    // Predicated region
    $region18: #{tpu_custom_call.1} parent=1 // pred_check
      _
    $region19: #{tpu_custom_call.1} parent=1 // pred_check_branch
      %35 = sbr.rel (0) target = $region21
    $region20: #{tpu_custom_call.1} parent=1 // pred_region
      _
    $region21: #{tpu_custom_call.1} parent=1 // pred_fallthru
      _
    // Predicated region
    $region22: #{tpu_custom_call.1} parent=1 // pred_check
      _
    $region23: #{tpu_custom_call.1} parent=1 // pred_check_branch
      %37 = sbr.rel (0) target = $region25
    $region24: #{tpu_custom_call.1} parent=1 // pred_region
      _
    $region25: #{tpu_custom_call.1} parent=1 // pred_fallthru
      _
    // Predicated region
    $region26: #{tpu_custom_call.1} parent=1 // pred_check
      _
    $region27: #{tpu_custom_call.1} parent=1 // pred_check_branch
      %39 = sbr.rel (0) target = $region29
    $region28: #{tpu_custom_call.1} parent=1 // pred_region
      _
    $region29: #{tpu_custom_call.1} parent=1 // pred_fallthru
      _
    // Predicated region
    $region30: #{tpu_custom_call.1} parent=1 // pred_check
      _
    $region31: #{tpu_custom_call.1} parent=1 // pred_check_branch
      %41 = sbr.rel (0) target = $region33
    $region32: #{tpu_custom_call.1} parent=1 // pred_region
      _
    $region33: #{tpu_custom_call.1} parent=1 // pred_fallthru
      _
    // Predicated region
    $region34: #{tpu_custom_call.1} parent=1 // pred_check
      _
    $region35: #{tpu_custom_call.1} parent=1 // pred_check_branch
      %43 = sbr.rel (0) target = $region37
    $region36: #{tpu_custom_call.1} parent=1 // pred_region
      _
    $region37: #{tpu_custom_call.1} parent=1 // pred_fallthru
      _
    // Predicated region
    $region38: #{tpu_custom_call.1} parent=1 // pred_check
      _
    $region39: #{tpu_custom_call.1} parent=1 // pred_check_branch
      %45 = sbr.rel (0) target = $region41
    $region40: #{tpu_custom_call.1} parent=1 // pred_region
      %46 = dma.done [#allocation3], 256
    $region41: #{tpu_custom_call.1} parent=1 // pred_fallthru
      _
    %v48 = vld [vmem:[%s0] sm:$0xff]
    %v49 = vpack.c.bf16 %v48, %v48
    %v50 = vld [vmem:[#allocation2] sm:$0xf]
    %v51 = vld [vmem:[#allocation2 + $0x4] sm:$0xf]
    %v52 = vld [vmem:[#allocation2 + $0x8] sm:$0xf]
    %v53 = vld [vmem:[#allocation2 + $0xc] sm:$0xf]
    %v54 = vld [vmem:[%s2] sm:$0x1]
    %v56 = vlaneseq
    %v57 = vshrl.u32 %v56, 7
    %v58 = vsub.s32 0, %v57
    %v59 = vrot.slane %v54, %v58
    %v65 = vunpack.c.l.b16 %v50
    %v66 = vunpack.c.l.b16 %v51
    %v67 = vunpack.c.l.b16 %v52
    %v68 = vunpack.c.l.b16 %v53
    %v69 = vpack.c.b16 %v66, %v65
    %v70 = vpack.c.b16 %v68, %v67
    %vm73 = vcmask 261120
    %v75 = vsel %vm73, %v49, 0
    %77 = vmatprep.subr.bf16.mxu0 0
    %78 = vmatpush1.bf16.msra.mxu0 %v69
    %79 = vmatprep.subr.bf16.mxu0 0
    %80 = vmatpush1.bf16.msra.mxu0 %v70
    %81 = vmatprep.subr.bf16.mxu0 0
    %82 = vmatpush1.bf16.msra.mxu0 0
    %83 = vmatprep.subr.bf16.mxu0 0
    %84 = vmatpush1.bf16.msra.mxu0 0
    %85 = vmatprep.subr.bf16.mxu0 0
    %86 = vmatpush1.bf16.msra.mxu0 0
    %87 = vmatprep.subr.bf16.mxu0 0
    %88 = vmatpush1.bf16.msra.mxu0 0
    %89 = vmatprep.subr.bf16.mxu0 0
    %90 = vmatpush1.bf16.msra.mxu0 0
    %91 = vmatprep.subr.bf16.mxu0 0
    %92 = vmatpush1.bf16.msra.mxu0 0
    %93 = vmatprep.subr.bf16.mxu0 0
    %94 = vmatpush1.bf16.msra.mxu0 0
    %95 = vmatprep.subr.bf16.mxu0 0
    %96 = vmatpush1.bf16.msra.mxu0 0
    %97 = vmatprep.subr.bf16.mxu0 0
    %98 = vmatpush1.bf16.msra.mxu0 0
    %99 = vmatprep.subr.bf16.mxu0 0
    %100 = vmatpush1.bf16.msra.mxu0 0
    %101 = vmatprep.subr.bf16.mxu0 0
    %102 = vmatpush1.bf16.msra.mxu0 0
    %103 = vmatprep.subr.bf16.mxu0 0
    %104 = vmatpush1.bf16.msra.mxu0 0
    %105 = vmatprep.subr.bf16.mxu0 0
    %106 = vmatpush1.bf16.msra.mxu0 0
    %107 = vmatprep.subr.bf16.mxu0 0
    %108 = vmatpush1.bf16.msra.mxu0 0
    %109 = vmatprep.mubr.bf16.mxu0 0
    %110 = vmatmul.mubr.bf16.gmra.mrb[0].mxu0 %v75
    %v111 = vpop.f32.mrb[0].mxu0
    %v112 = vadd.f32 %v59, %v111
    %v113 = vpop.f32.mrb[0].mxu0
    %v114 = vpop.f32.mrb[0].mxu0
    %v115 = vpop.f32.mrb[0].mxu0
    %116 = vdwg.mxu0
    %v117 = vmax.f32 %v112, 0.0
    %v118 = vpack.c.bf16 %v117, %v117
    %v119 = vld [vmem:[%s3] sm:$0xf]
    %v120 = vld [vmem:[%s3 + $0x4] sm:$0xf]
    %v121 = vld [vmem:[%s3 + $0x8] sm:$0xf]
    %v122 = vld [vmem:[%s3 + $0xc] sm:$0xf]
    %v123 = vld [vmem:[%s3 + $0x10] sm:$0xf]
    %v124 = vld [vmem:[%s3 + $0x14] sm:$0xf]
    %v125 = vld [vmem:[%s3 + $0x18] sm:$0xf]
    %v126 = vld [vmem:[%s3 + $0x1c] sm:$0xf]
    %v127 = vld [vmem:[%s3 + $0x20] sm:$0xf]
    %v128 = vld [vmem:[%s3 + $0x24] sm:$0xf]
    %v129 = vld [vmem:[%s3 + $0x28] sm:$0xf]
    %v130 = vld [vmem:[%s3 + $0x2c] sm:$0xf]
    %v131 = vld [vmem:[%s3 + $0x30] sm:$0xf]
    %v132 = vld [vmem:[%s3 + $0x34] sm:$0xf]
    %v133 = vld [vmem:[%s3 + $0x38] sm:$0xf]
    %v134 = vld [vmem:[%s3 + $0x3c] sm:$0xf]
    %v135 = vld [vmem:[%s4] sm:$0x1]
    %v137 = vlaneseq
    %v138 = vshrl.u32 %v137, 7
    %v139 = vsub.s32 0, %v138
    %v140 = vrot.slane %v135, %v139
    %v158 = vunpack.c.l.b16 %v119
    %v159 = vunpack.c.l.b16 %v120
    %v160 = vunpack.c.l.b16 %v121
    %v161 = vunpack.c.l.b16 %v122
    %v162 = vunpack.c.l.b16 %v123
    %v163 = vunpack.c.l.b16 %v124
    %v164 = vunpack.c.l.b16 %v125
    %v165 = vunpack.c.l.b16 %v126
    %v166 = vunpack.c.l.b16 %v127
    %v167 = vunpack.c.l.b16 %v128
    %v168 = vunpack.c.l.b16 %v129
    %v169 = vunpack.c.l.b16 %v130
    %v170 = vunpack.c.l.b16 %v131
    %v171 = vunpack.c.l.b16 %v132
    %v172 = vunpack.c.l.b16 %v133
    %v173 = vunpack.c.l.b16 %v134
    %v174 = vpack.c.b16 %v159, %v158
    %v175 = vpack.c.b16 %v161, %v160
    %v176 = vpack.c.b16 %v163, %v162
    %v177 = vpack.c.b16 %v165, %v164
    %v178 = vpack.c.b16 %v167, %v166
    %v179 = vpack.c.b16 %v169, %v168
    %v180 = vpack.c.b16 %v171, %v170
    %v181 = vpack.c.b16 %v173, %v172
    %190 = vmatprep.subr.bf16.mxu0 0
    %191 = vmatpush1.bf16.msra.mxu0 %v174
    %192 = vmatprep.subr.bf16.mxu0 0
    %193 = vmatpush1.bf16.msra.mxu0 %v175
    %194 = vmatprep.subr.bf16.mxu0 0
    %195 = vmatpush1.bf16.msra.mxu0 %v176
    %196 = vmatprep.subr.bf16.mxu0 0
    %197 = vmatpush1.bf16.msra.mxu0 %v177
    %198 = vmatprep.subr.bf16.mxu0 0
    %199 = vmatpush1.bf16.msra.mxu0 %v178
    %200 = vmatprep.subr.bf16.mxu0 0
    %201 = vmatpush1.bf16.msra.mxu0 %v179
    %202 = vmatprep.subr.bf16.mxu0 0
    %203 = vmatpush1.bf16.msra.mxu0 %v180
    %204 = vmatprep.subr.bf16.mxu0 0
    %205 = vmatpush1.bf16.msra.mxu0 %v181
    %206 = vmatprep.subr.bf16.mxu0 0
    %207 = vmatpush1.bf16.msra.mxu0 0
    %208 = vmatprep.subr.bf16.mxu0 0
    %209 = vmatpush1.bf16.msra.mxu0 0
    %210 = vmatprep.subr.bf16.mxu0 0
    %211 = vmatpush1.bf16.msra.mxu0 0
    %212 = vmatprep.subr.bf16.mxu0 0
    %213 = vmatpush1.bf16.msra.mxu0 0
    %214 = vmatprep.subr.bf16.mxu0 0
    %215 = vmatpush1.bf16.msra.mxu0 0
    %216 = vmatprep.subr.bf16.mxu0 0
    %217 = vmatpush1.bf16.msra.mxu0 0
    %218 = vmatprep.subr.bf16.mxu0 0
    %219 = vmatpush1.bf16.msra.mxu0 0
    %220 = vmatprep.subr.bf16.mxu0 0
    %221 = vmatpush1.bf16.msra.mxu0 0
    %222 = vmatprep.mubr.bf16.mxu0 0
    %223 = vmatmul.mubr.bf16.gmra.mrb[0].mxu0 %v118
    %v224 = vpop.f32.mrb[0].mxu0
    %v225 = vadd.f32 %v140, %v224
    %v226 = vpop.f32.mrb[0].mxu0
    %v227 = vpop.f32.mrb[0].mxu0
    %v228 = vpop.f32.mrb[0].mxu0
    %229 = vdwg.mxu0
    %v230 = vmax.f32 %v225, 0.0
    %v231 = vpack.c.bf16 %v230, %v230
    %v232 = vld [vmem:[%s5] sm:$0xf]
    %v233 = vld [vmem:[%s5 + $0x4] sm:$0xf]
    %v234 = vld [vmem:[%s5 + $0x8] sm:$0xf]
    %v235 = vld [vmem:[%s5 + $0xc] sm:$0xf]
    %v236 = vld [vmem:[%s5 + $0x10] sm:$0xf]
    %v237 = vld [vmem:[%s5 + $0x14] sm:$0xf]
    %v238 = vld [vmem:[%s5 + $0x18] sm:$0xf]
    %v239 = vld [vmem:[%s5 + $0x1c] sm:$0xf]
    %v240 = vld [vmem:[%s5 + $0x20] sm:$0xf]
    %v241 = vld [vmem:[%s5 + $0x24] sm:$0xf]
    %v242 = vld [vmem:[%s5 + $0x28] sm:$0xf]
    %v243 = vld [vmem:[%s5 + $0x2c] sm:$0xf]
    %v244 = vld [vmem:[%s5 + $0x30] sm:$0xf]
    %v245 = vld [vmem:[%s5 + $0x34] sm:$0xf]
    %v246 = vld [vmem:[%s5 + $0x38] sm:$0xf]
    %v247 = vld [vmem:[%s5 + $0x3c] sm:$0xf]
    %v248 = vld [vmem:[%s6] sm:$0x1]
    %v250 = vlaneseq
    %v251 = vshrl.u32 %v250, 7
    %v252 = vsub.s32 0, %v251
    %v253 = vrot.slane %v248, %v252
    %v271 = vunpack.c.l.b16 %v232
    %v272 = vunpack.c.l.b16 %v233
    %v273 = vunpack.c.l.b16 %v234
    %v274 = vunpack.c.l.b16 %v235
    %v275 = vunpack.c.l.b16 %v236
    %v276 = vunpack.c.l.b16 %v237
    %v277 = vunpack.c.l.b16 %v238
    %v278 = vunpack.c.l.b16 %v239
    %v279 = vunpack.c.l.b16 %v240
    %v280 = vunpack.c.l.b16 %v241
    %v281 = vunpack.c.l.b16 %v242
    %v282 = vunpack.c.l.b16 %v243
    %v283 = vunpack.c.l.b16 %v244
    %v284 = vunpack.c.l.b16 %v245
    %v285 = vunpack.c.l.b16 %v246
    %v286 = vunpack.c.l.b16 %v247
    %v287 = vpack.c.b16 %v272, %v271
    %v288 = vpack.c.b16 %v274, %v273
    %v289 = vpack.c.b16 %v276, %v275
    %v290 = vpack.c.b16 %v278, %v277
    %v291 = vpack.c.b16 %v280, %v279
    %v292 = vpack.c.b16 %v282, %v281
    %v293 = vpack.c.b16 %v284, %v283
    %v294 = vpack.c.b16 %v286, %v285
    %303 = vmatprep.subr.bf16.mxu0 0
    %304 = vmatpush1.bf16.msra.mxu0 %v287
    %305 = vmatprep.subr.bf16.mxu0 0
    %306 = vmatpush1.bf16.msra.mxu0 %v288
    %307 = vmatprep.subr.bf16.mxu0 0
    %308 = vmatpush1.bf16.msra.mxu0 %v289
    %309 = vmatprep.subr.bf16.mxu0 0
    %310 = vmatpush1.bf16.msra.mxu0 %v290
    %311 = vmatprep.subr.bf16.mxu0 0
    %312 = vmatpush1.bf16.msra.mxu0 %v291
    %313 = vmatprep.subr.bf16.mxu0 0
    %314 = vmatpush1.bf16.msra.mxu0 %v292
    %315 = vmatprep.subr.bf16.mxu0 0
    %316 = vmatpush1.bf16.msra.mxu0 %v293
    %317 = vmatprep.subr.bf16.mxu0 0
    %318 = vmatpush1.bf16.msra.mxu0 %v294
    %319 = vmatprep.subr.bf16.mxu0 0
    %320 = vmatpush1.bf16.msra.mxu0 0
    %321 = vmatprep.subr.bf16.mxu0 0
    %322 = vmatpush1.bf16.msra.mxu0 0
    %323 = vmatprep.subr.bf16.mxu0 0
    %324 = vmatpush1.bf16.msra.mxu0 0
    %325 = vmatprep.subr.bf16.mxu0 0
    %326 = vmatpush1.bf16.msra.mxu0 0
    %327 = vmatprep.subr.bf16.mxu0 0
    %328 = vmatpush1.bf16.msra.mxu0 0
    %329 = vmatprep.subr.bf16.mxu0 0
    %330 = vmatpush1.bf16.msra.mxu0 0
    %331 = vmatprep.subr.bf16.mxu0 0
    %332 = vmatpush1.bf16.msra.mxu0 0
    %333 = vmatprep.subr.bf16.mxu0 0
    %334 = vmatpush1.bf16.msra.mxu0 0
    %335 = vmatprep.mubr.bf16.mxu0 0
    %336 = vmatmul.mubr.bf16.gmra.mrb[0].mxu0 %v231
    %v337 = vpop.f32.mrb[0].mxu0
    %v338 = vadd.f32 %v253, %v337
    %v339 = vpop.f32.mrb[0].mxu0
    %v340 = vpop.f32.mrb[0].mxu0
    %v341 = vpop.f32.mrb[0].mxu0
    %342 = vdwg.mxu0
    %v343 = vxor.u32 %v338, 2147483648
    %v344 = vmul.f32 %v343, 1.442695
    %v345 = vpow.pop %v344
    %v346 = vadd.f32 %v345, 1.0
    %v347 = vrcp.pop %v346
    %v348 = vmul.f32 1.0, %v347
    %v349 = vld [vmem:[%s8] sm:$0x1]
    %v351 = vlaneseq
    %v352 = vshrl.u32 %v351, 7
    %v353 = vsub.s32 0, %v352
    %v354 = vrot.slane %v349, %v353
    %v356 = vmul.f32 %v348, %v354
    %v357 = vld [vmem:[%s7] sm:$0x1]
    %v359 = vlaneseq
    %v360 = vshrl.u32 %v359, 7
    %v361 = vsub.s32 0, %v360
    %v362 = vrot.slane %v357, %v361
    %v364 = vadd.f32 %v356, %v362
    %vm365 = vcmask 64512
    %366 = vst.msk [vmem:[#allocation5] sm:$0xff] %vm365, %v364
    // Predicated region
    $region42: #{tpu_custom_call.1} parent=1 // pred_check
      _
    $region43: #{tpu_custom_call.1} parent=1 // pred_check_branch
      %368 = sbr.rel (0) target = $region45
    $region44: #{tpu_custom_call.1} parent=1 // pred_region
      %s370 = ssub.s32 128, 128
      %371 = vsyncadd [#allocation4], %s370
      %s373 = sshll.u32 [#allocation5], 4
      %s374 = int_to_ptr.vmem [resolvable:$true] %s373
      %376 = dma.vmem_to_hbm [thread:$0]  %s374, 128, %s9, [#allocation4]
    $region45: #{tpu_custom_call.1} parent=1 // pred_fallthru
      _
    // Predicated region
    $region46: #{tpu_custom_call.1} parent=1 // pred_check
      _
    $region47: #{tpu_custom_call.1} parent=1 // pred_check_branch
      %378 = sbr.rel (0) target = $region49
    $region48: #{tpu_custom_call.1} parent=1 // pred_region
      %379 = dma.done [#allocation4], 128
    $region49: #{tpu_custom_call.1} parent=1 // pred_fallthru
      _
    %380 = vsyncpa [#allocation3], 1
    %381 = vsyncpa [#allocation4], 1

</llo_original>
